<compile_context>
chip_gen: v5e
topology: v5e:2x2
jax: 0.10.0
libtpu: 0.0.40
codegen_flags: <defaults>
</compile_context>

<pallas_src>
import math

import jax
import jax.numpy as jnp
from jax.experimental import pallas as pl
from jax.experimental.pallas import tpu as pltpu


def _gcn_fused_kernel(op_ref, b_ref, x_ref, o_ref):
    # op_ref: [K, P]   fused adj (x) W operator column panel (VMEM resident)
    # b_ref : [1, P]   bias panel (f32)
    # x_ref : [TB, K]  lane-dense input row block
    # o_ref : [TB, P]  lane-dense output block
    acc = jnp.dot(x_ref[...], op_ref[...],
                  preferred_element_type=jnp.float32)      # [TB, P] f32
    o_ref[...] = (acc + b_ref[...]).astype(o_ref.dtype)


def _round_up(x, m):
    return ((x + m - 1) // m) * m


def _vmem_capacity_bytes():
    """Per-core VMEM capacity; conservative fallback if the query fails."""
    try:
        return int(pltpu.get_tpu_info().vmem_capacity_bytes)
    except Exception:
        return 64 * 1024 * 1024  # v7x per-TC size; safe lower bound everywhere


def _pick_panel(ncout_p, kdim, op_bytes, op_budget):
    """Largest 128-multiple divisor of ncout_p whose double-buffered fused
    panel fits the operator budget."""
    m = ncout_p // 128
    for d in range(m, 0, -1):
        if m % d:
            continue
        panel = 128 * d
        if 2 * kdim * panel * op_bytes <= op_budget:
            return panel
    return None


def _pick_tb(bt, row_bytes, block_budget, sublane):
    """Rows of the flattened slabs processed per grid step.

    Returns (TB, steps, padded_BT). TB is a multiple of the packing sublane
    count (or the full dim), and padded_BT = steps * TB >= bt.
    """
    cap = max(sublane, block_budget // (2 * max(row_bytes, 1)))  # 2x: dbl-buf
    cap = min(cap, 4096)          # multi-MiB per-step DMAs already amortize
    cap -= cap % sublane          # the ~0.35us fixed per-step overhead
    cap = max(cap, sublane)
    if bt <= cap:
        # Single full-dim block: always tiling-legal, no padding needed.
        return bt, 1, bt
    steps = -(-bt // cap)
    # Even step count keeps both v7x TensorCores busy; only pad when the
    # wasted block is a small fraction of the work (harmless on 1-TC chips).
    if steps % 2 == 1 and steps >= 5:
        steps += 1
    return cap, steps, steps * cap


def graph_conv_pallas(x, adj, weight, bias=None, *,
                      compute_dtype=None, out_dtype=None):
    """x: [B, T, N, Cin] -> [B, T, N, Cout].

    compute_dtype: dtype used for x and the fused operator inside the kernel
        (default: x.dtype). For the full bf16 bandwidth win pass bf16 x
        directly; a wrapper-side astype is an extra HBM pass over x.
    out_dtype: output dtype (default: x.dtype). bf16 output halves the widest
        HBM stream when downstream tolerates it.
    """
    B, T, N, Cin = x.shape
    Cout = weight.shape[1]
    BT = B * T
    Kdim = N * Cin
    NCout = N * Cout

    cdt = jnp.dtype(compute_dtype) if compute_dtype is not None else x.dtype
    odt = jnp.dtype(out_dtype) if out_dtype is not None else x.dtype
    cdt_b = jnp.dtype(cdt).itemsize
    odt_b = jnp.dtype(odt).itemsize

    # Lane-pad the output width to a multiple of 128 so stores are unmasked
    # full-lane vst. Only the small wrapper-built operator/bias are padded;
    # x and the contraction dim are untouched (no extra HBM pass over x;
    # a full-dim K block is tiling-legal even when K % 128 != 0).
    NCout_p = _round_up(NCout, 128)

    # Fold graph operator and weight into one matrix (built once per call in
    # XLA; hoisted/cached by jit when adj and weight are static across calls).
    fused = jnp.einsum('hi,kj->ikhj', adj.astype(jnp.float32),
                       weight.astype(jnp.float32))
    fused = fused.reshape(Kdim, NCout)
    if NCout_p != NCout:
        fused = jnp.pad(fused, ((0, 0), (0, NCout_p - NCout)))
    fused = fused.astype(cdt)

    # Bias tiled per node so the add is a plain lane-wise f32 add in-kernel.
    if bias is None:
        bias_row = jnp.zeros((1, NCout_p), jnp.float32)
    else:
        bias_row = jnp.tile(bias.astype(jnp.float32).reshape(1, Cout), (1, N))
        if NCout_p != NCout:
            bias_row = jnp.pad(bias_row, ((0, 0), (0, NCout_p - NCout)))

    # --- VMEM budgets derived from the actual part --------------------------
    capacity = _vmem_capacity_bytes()
    total_budget = (capacity * 3) // 4        # headroom for compiler scratch
    op_budget = total_budget // 3             # double-buffered operator panel
    block_budget = total_budget - op_budget   # double-buffered in/out blocks

    panel = _pick_panel(NCout_p, Kdim, cdt_b, op_budget)
    if panel is None:
        # TODO(synk): K-tiled accumulating fallback (see header comment).
        raise NotImplementedError(
            "fused adj(x)W operator too large for VMEM even as a single "
            "128-column panel")
    n_panels = NCout_p // panel

    # Sublane packing multiple of the compute dtype: 8 f32 / 16 bf16 / 32 int8.
    sublane = max(8, 32 // cdt_b)
    row_bytes = Kdim * cdt_b + panel * odt_b
    TB, steps, BT_p = _pick_tb(BT, row_bytes, block_budget, sublane)

    # Lane-dense input slab (pure reshape when dtypes already match).
    x_flat = x.reshape(BT, Kdim)
    if x_flat.dtype != cdt:
        # NOTE: standalone HBM convert pass; callers wanting the bf16
        # bandwidth win should pass bf16 x instead of relying on this cast.
        x_flat = x_flat.astype(cdt)
    if BT_p != BT:
        x_flat = jnp.pad(x_flat, ((0, BT_p - BT), (0, 0)))

    # Self-consistent VMEM limit: actual allocation + headroom, capped at HW.
    op_panel_bytes = Kdim * panel * cdt_b
    bias_panel_bytes = 8 * panel * 4                    # (1,P) pads to (8,P)
    in_block_bytes = TB * Kdim * cdt_b
    out_block_bytes = TB * panel * odt_b
    vmem_limit = (2 * op_panel_bytes + 2 * bias_panel_bytes
                  + 2 * (in_block_bytes + out_block_bytes)
                  + 2 * 1024 * 1024)
    vmem_limit = int(min(max(vmem_limit, 16 * 1024 * 1024), capacity))

    # TODO(synk): single-buffer the grid-invariant operator/bias operands
    # (pipeline_mode=pl.Buffered(1)) once verified on the deployed Mosaic
    # version; meanwhile they are accounted as 2x in vmem_limit above.
    out_flat = pl.pallas_call(
        _gcn_fused_kernel,
        out_shape=jax.ShapeDtypeStruct((BT_p, NCout_p), odt),
        grid_spec=pltpu.PrefetchScalarGridSpec(
            num_scalar_prefetch=0,
            grid=(steps, n_panels),
            in_specs=[
                pl.BlockSpec((Kdim, panel), lambda i, j: (0, j)),  # fused op
                pl.BlockSpec((1, panel), lambda i, j: (0, j)),     # bias
                pl.BlockSpec((TB, Kdim), lambda i, j: (i, 0)),     # x rows
            ],
            out_specs=pl.BlockSpec((TB, panel), lambda i, j: (i, j)),
        ),
        compiler_params=pltpu.CompilerParams(
            dimension_semantics=("parallel", "arbitrary"),
            vmem_limit_bytes=vmem_limit),
    )(fused, bias_row, x_flat)

    out = out_flat
    if BT_p != BT:
        out = out[:BT]
    if NCout_p != NCout:
        out = out[:, :NCout]
    return out.reshape(B, T, N, Cout)


def init_params(key, in_channels, out_channels):
    """Deterministic re-implementation of the PyTorch reset_parameters()."""
    kw, kb = jax.random.split(key)
    # kaiming_uniform_(weight, a=sqrt(5)) on a [Cin, Cout] tensor:
    # PyTorch fan_in of a 2-D tensor is size(1) = out_channels (intentional
    # replication of the module's quirk).
    a = math.sqrt(5.0)
    fan_in_w = out_channels
    gain = math.sqrt(2.0 / (1.0 + a * a))
    w_bound = gain * math.sqrt(3.0 / fan_in_w)
    weight = jax.random.uniform(kw, (in_channels, out_channels),
                                jnp.float32, -w_bound, w_bound)
    b_bound = 1.0 / math.sqrt(fan_in_w)
    bias = jax.random.uniform(kb, (out_channels,),
                              jnp.float32, -b_bound, b_bound)
    return weight, bias


if __name__ == "__main__":
    key = jax.random.PRNGKey(0)
    k_x, k_adj, k_p = jax.random.split(key, 3)

    B, T, N = 2, 4, 8
    Cin, Cout = 16, 32

    x = jax.random.normal(k_x, (B, T, N, Cin), jnp.float32)
    adj = jax.random.normal(k_adj, (N, N), jnp.float32)
    weight, bias = init_params(k_p, Cin, Cout)

    # f32 path (semantics of the PyTorch module).
    out = graph_conv_pallas(x, adj, weight, bias)
    out = jax.block_until_ready(out)

    # Pure-JAX reference (mirrors the PyTorch einsum chain).
    first_ref = jnp.einsum('hi,btij->bthj', adj, x)
    ref = jnp.einsum('bthi,ij->bthj', first_ref, weight) + bias
    assert out.shape == (B, T, N, Cout)
    # Tolerance covers both exact-f32 and multi-pass MXU f32 matmul modes;
    # any layout/semantics bug would produce O(1) errors.
    assert jnp.allclose(out, ref, atol=2e-2, rtol=2e-2), \
        float(jnp.max(jnp.abs(out - ref)))

    # bf16 fast path: caller passes bf16 x (no wrapper-side convert pass);
    # f32 output here only so it can be compared against the f32 reference.
    out_bf16 = graph_conv_pallas(x.astype(jnp.bfloat16), adj, weight, bias,
                                 out_dtype=jnp.float32)
    out_bf16 = jax.block_until_ready(out_bf16)
    assert out_bf16.shape == (B, T, N, Cout)
    assert jnp.allclose(out_bf16, ref, atol=2e-1, rtol=1e-1)

    print("KERNEL_OK")
</pallas_src>

<mosaic_0001>
module attributes {stable_mosaic.version = 11 : i64} {
  func.func @_gcn_fused_kernel(%arg0: i32, %arg1: i32, %arg2: memref<128x256xf32, #tpu.memory_space<vmem>>, %arg3: memref<1x256xf32, #tpu.memory_space<vmem>>, %arg4: memref<8x128xf32, #tpu.memory_space<vmem>>, %arg5: memref<8x256xf32, #tpu.memory_space<vmem>>) attributes {dimension_semantics = [#tpu.dimension_semantics<parallel>, #tpu.dimension_semantics<arbitrary>], iteration_bounds = array<i64: 1, 1>, scalar_prefetch = 0 : i64, scratch_operands = 0 : i64, tpu.core_type = #tpu.core_type<tc>, window_params = [{transform_indices = @transform_0, window_bounds = array<i64: 128, 256>}, {transform_indices = @transform_1, window_bounds = array<i64: 1, 256>}, {transform_indices = @transform_2, window_bounds = array<i64: 8, 128>}, {transform_indices = @transform_3, window_bounds = array<i64: 8, 256>}]} {
    %c0 = arith.constant 0 : index
    %c0_0 = arith.constant 0 : index
    %0 = vector.load %arg4[%c0, %c0_0] : memref<8x128xf32, #tpu.memory_space<vmem>>, vector<8x128xf32>
    %c0_1 = arith.constant 0 : index
    %c0_2 = arith.constant 0 : index
    %1 = vector.load %arg2[%c0_1, %c0_2] : memref<128x256xf32, #tpu.memory_space<vmem>>, vector<128x256xf32>
    %cst = arith.constant dense<0.000000e+00> : vector<8x256xf32>
    %2 = tpu.matmul %0, %1, %cst {dimension_numbers = #tpu.dot_dimension_numbers<[1], [0], [0], [1], [0, 0, 1, 1], [], []>} : vector<8x128xf32>, vector<128x256xf32>, vector<8x256xf32> -> vector<8x256xf32>
    %c0_3 = arith.constant 0 : index
    %c0_4 = arith.constant 0 : index
    %3 = vector.load %arg3[%c0_3, %c0_4] : memref<1x256xf32, #tpu.memory_space<vmem>>, vector<1x256xf32>
    %4 = vector.broadcast %3 : vector<1x256xf32> to vector<8x256xf32>
    %5 = arith.addf %2, %4 : vector<8x256xf32>
    %c0_5 = arith.constant 0 : index
    %c0_6 = arith.constant 0 : index
    %6 = vector.load %arg5[%c0_5, %c0_6] : memref<8x256xf32, #tpu.memory_space<vmem>>, vector<8x256xf32>
    tpu.vector_store %arg5[%c0_5, %c0_6], %5 {strides = array<i32>} : memref<8x256xf32, #tpu.memory_space<vmem>>, vector<8x256xf32>,
    return
  }
  func.func @transform_0(%arg0: i32, %arg1: i32) -> (i32, i32) {
    %c0_i32 = arith.constant 0 : i32
    %c0_i32_0 = arith.constant 0 : i32
    return %c0_i32, %arg1 : i32, i32
  }
  func.func @transform_1(%arg0: i32, %arg1: i32) -> (i32, i32) {
    %c0_i32 = arith.constant 0 : i32
    %c0_i32_0 = arith.constant 0 : i32
    return %c0_i32, %arg1 : i32, i32
  }
  func.func @transform_2(%arg0: i32, %arg1: i32) -> (i32, i32) {
    %c0_i32 = arith.constant 0 : i32
    %c0_i32_0 = arith.constant 0 : i32
    return %arg0, %c0_i32 : i32, i32
  }
  func.func @transform_3(%arg0: i32, %arg1: i32) -> (i32, i32) {
    %c0_i32 = arith.constant 0 : i32
    return %arg0, %arg1 : i32, i32
  }
}

</mosaic_0001>

<llo_original>
// kernel: tpu_custom_call.1
$region0: #{tpu_custom_call.1}
  #allocation0 [shape = 'u32[]', space=smem, size = 0x4, offset = 0x4, fixed_abs, tag = 'smem constant byte address 0x4 - core index']
  #allocation1 [shape = 'u32[72,128]{1,0:T(1,128)}', space=vmem, size = 0x9000, scoped, tag = 'internal scratch']
  %s0 = inlined_call_operand.hbm [shape: f32[128,256], index: 0, kind: input, shape index: {}]
  %s1 = inlined_call_operand.hbm [shape: f32[1,256], index: 1, kind: input, shape index: {}]
  %s2 = inlined_call_operand.hbm [shape: f32[8,128], index: 2, kind: input, shape index: {}]
  %s3 = inlined_call_operand.hbm [shape: f32[8,256], index: 3, kind: output, shape index: {}]
  %s4 = sld [smem:[#allocation0]]
  $region34: #{tpu_custom_call.1} parent=0
    _
  %s6 = ssub.s32 1, %s4
  %s7 = scalar_select 0, %s6, %s4
  $region1: #{tpu_custom_call.1} parent=0
    #allocation2 [shape = 'u8[131072]{0}', space=vmem, size = 0x20000, scoped, tag = 'input window, operand 0, single buffered']
    #allocation3 [shape = 's32[1]{0}', space=sflag, size = 0x4, scoped, tag = 'scoped memory for tpu_custom_call.1']
    #allocation4 [shape = 's32[1]{0}', space=sflag, size = 0x4, scoped, tag = 'scoped memory for tpu_custom_call.1']
    #allocation5 [shape = 'u8[1024]{0}', space=vmem, size = 0x400, scoped, tag = 'input window, operand 1, single buffered']
    #allocation6 [shape = 's32[1]{0}', space=sflag, size = 0x4, scoped, tag = 'scoped memory for tpu_custom_call.1']
    #allocation7 [shape = 'u8[4096]{0}', space=vmem, size = 0x1000, scoped, tag = 'input window, operand 2, single buffered']
    #allocation8 [shape = 'u8[8192]{0}', space=vmem, size = 0x2000, scoped, tag = 'output window, operand 0, single buffered']
    %8 = vsyncpa [#allocation3], 0
    %9 = vsyncpa [#allocation6], 0
    %10 = vsyncpa [#allocation4], 0
    // Predicated region
    $region2: #{tpu_custom_call.1} parent=1 // pred_check
      _
    $region3: #{tpu_custom_call.1} parent=1 // pred_check_branch
      %12 = sbr.rel (0) target = $region5
    $region4: #{tpu_custom_call.1} parent=1 // pred_region
      %14 = vsyncadd [#allocation3], 0
      %s15 = sshll.u32 %s0, 4
      %s16 = int_to_ptr.hbm [resolvable:$true] %s15
      %s17 = sshll.u32 [#allocation2], 4
      %s18 = int_to_ptr.vmem [resolvable:$true] %s17
      %23 = dma.hbm_to_vmem [thread:$0]  %s16, 4096, %s18, [#allocation3], 256, 256, 16
    $region5: #{tpu_custom_call.1} parent=1 // pred_fallthru
      _
    // Predicated region
    $region6: #{tpu_custom_call.1} parent=1 // pred_check
      _
    $region7: #{tpu_custom_call.1} parent=1 // pred_check_branch
      %25 = sbr.rel (0) target = $region9
    $region8: #{tpu_custom_call.1} parent=1 // pred_region
      %27 = vsyncadd [#allocation6], 0
      %s29 = sshll.u32 %s1, 4
      %s30 = int_to_ptr.hbm [resolvable:$true] %s29
      %s31 = sshll.u32 [#allocation5], 4
      %s32 = int_to_ptr.vmem [resolvable:$true] %s31
      %34 = dma.hbm_to_vmem [thread:$0]  %s30, 32, %s32, [#allocation6]
    $region9: #{tpu_custom_call.1} parent=1 // pred_fallthru
      _
    // Predicated region
    $region10: #{tpu_custom_call.1} parent=1 // pred_check
      _
    $region11: #{tpu_custom_call.1} parent=1 // pred_check_branch
      %36 = sbr.rel (0) target = $region13
    $region12: #{tpu_custom_call.1} parent=1 // pred_region
      %38 = vsyncadd [#allocation6], 0
      %s40 = sshll.u32 %s2, 4
      %s41 = int_to_ptr.hbm [resolvable:$true] %s40
      %s42 = sshll.u32 [#allocation7], 4
      %s43 = int_to_ptr.vmem [resolvable:$true] %s42
      %45 = dma.hbm_to_vmem [thread:$0]  %s41, 128, %s43, [#allocation6]
    $region13: #{tpu_custom_call.1} parent=1 // pred_fallthru
      _
    // Predicated region
    $region14: #{tpu_custom_call.1} parent=1 // pred_check
      _
    $region15: #{tpu_custom_call.1} parent=1 // pred_check_branch
      %47 = sbr.rel (0) target = $region17
    $region16: #{tpu_custom_call.1} parent=1 // pred_region
      %49 = dma.done [#allocation3], 4096
    $region17: #{tpu_custom_call.1} parent=1 // pred_fallthru
      _
    // Predicated region
    $region18: #{tpu_custom_call.1} parent=1 // pred_check
      _
    $region19: #{tpu_custom_call.1} parent=1 // pred_check_branch
      %51 = sbr.rel (0) target = $region21
    $region20: #{tpu_custom_call.1} parent=1 // pred_region
      %53 = dma.done [#allocation6], 32
    $region21: #{tpu_custom_call.1} parent=1 // pred_fallthru
      _
    // Predicated region
    $region22: #{tpu_custom_call.1} parent=1 // pred_check
      _
    $region23: #{tpu_custom_call.1} parent=1 // pred_check_branch
      %55 = sbr.rel (0) target = $region25
    $region24: #{tpu_custom_call.1} parent=1 // pred_region
      %57 = dma.done [#allocation6], 128
    $region25: #{tpu_custom_call.1} parent=1 // pred_fallthru
      _
    %v58 = vld [vmem:[#allocation7] sm:$0xff]
    %v59 = vld [vmem:[#allocation2] sm:$0xff]
    %v60 = vld [vmem:[#allocation2 + $0x8] sm:$0xff]
    %v61 = vld [vmem:[#allocation2 + $0x10] sm:$0xff]
    %v62 = vld [vmem:[#allocation2 + $0x18] sm:$0xff]
    %v63 = vld [vmem:[#allocation2 + $0x20] sm:$0xff]
    %v64 = vld [vmem:[#allocation2 + $0x28] sm:$0xff]
    %v65 = vld [vmem:[#allocation2 + $0x30] sm:$0xff]
    %v66 = vld [vmem:[#allocation2 + $0x38] sm:$0xff]
    %v67 = vld [vmem:[#allocation2 + $0x40] sm:$0xff]
    %v68 = vld [vmem:[#allocation2 + $0x48] sm:$0xff]
    %v69 = vld [vmem:[#allocation2 + $0x50] sm:$0xff]
    %v70 = vld [vmem:[#allocation2 + $0x58] sm:$0xff]
    %v71 = vld [vmem:[#allocation2 + $0x60] sm:$0xff]
    %v72 = vld [vmem:[#allocation2 + $0x68] sm:$0xff]
    %v73 = vld [vmem:[#allocation2 + $0x70] sm:$0xff]
    %v74 = vld [vmem:[#allocation2 + $0x78] sm:$0xff]
    %v75 = vld [vmem:[#allocation2 + $0x80] sm:$0xff]
    %v76 = vld [vmem:[#allocation2 + $0x88] sm:$0xff]
    %v77 = vld [vmem:[#allocation2 + $0x90] sm:$0xff]
    %v78 = vld [vmem:[#allocation2 + $0x98] sm:$0xff]
    %v79 = vld [vmem:[#allocation2 + $0xa0] sm:$0xff]
    %v80 = vld [vmem:[#allocation2 + $0xa8] sm:$0xff]
    %v81 = vld [vmem:[#allocation2 + $0xb0] sm:$0xff]
    %v82 = vld [vmem:[#allocation2 + $0xb8] sm:$0xff]
    %v83 = vld [vmem:[#allocation2 + $0xc0] sm:$0xff]
    %v84 = vld [vmem:[#allocation2 + $0xc8] sm:$0xff]
    %v85 = vld [vmem:[#allocation2 + $0xd0] sm:$0xff]
    %v86 = vld [vmem:[#allocation2 + $0xd8] sm:$0xff]
    %v87 = vld [vmem:[#allocation2 + $0xe0] sm:$0xff]
    %v88 = vld [vmem:[#allocation2 + $0xe8] sm:$0xff]
    %v89 = vld [vmem:[#allocation2 + $0xf0] sm:$0xff]
    %v90 = vld [vmem:[#allocation2 + $0xf8] sm:$0xff]
    %v91 = vld [vmem:[#allocation5] sm:$0x3]
    %v93 = vperm.slane %v91, 0
    %v94 = vperm.slane %v91, 1
    %97 = vmatpush.msra.mxu0 %v89
    %98 = vmatpush.msra.mxu0 %v87
    %99 = vmatpush.msra.mxu0 %v85
    %100 = vmatpush.msra.mxu0 %v83
    %101 = vmatpush.msra.mxu0 %v81
    %102 = vmatpush.msra.mxu0 %v79
    %103 = vmatpush.msra.mxu0 %v77
    %104 = vmatpush.msra.mxu0 %v75
    %105 = vmatpush.msra.mxu0 %v73
    %106 = vmatpush.msra.mxu0 %v71
    %107 = vmatpush.msra.mxu0 %v69
    %108 = vmatpush.msra.mxu0 %v67
    %109 = vmatpush.msra.mxu0 %v65
    %110 = vmatpush.msra.mxu0 %v63
    %111 = vmatpush.msra.mxu0 %v61
    %112 = vmatpush.msra.mxu0 %v59
    %113 = vmatmul.f32.gmra.mxu0 %v58
    %v114 = vpop.f32.mrf.mxu0
    %v115 = vadd.f32 %v93, %v114
    %116 = vdwg.mxu0
    %117 = vmatpush.msra.mxu0 %v90
    %118 = vmatpush.msra.mxu0 %v88
    %119 = vmatpush.msra.mxu0 %v86
    %120 = vmatpush.msra.mxu0 %v84
    %121 = vmatpush.msra.mxu0 %v82
    %122 = vmatpush.msra.mxu0 %v80
    %123 = vmatpush.msra.mxu0 %v78
    %124 = vmatpush.msra.mxu0 %v76
    %125 = vmatpush.msra.mxu0 %v74
    %126 = vmatpush.msra.mxu0 %v72
    %127 = vmatpush.msra.mxu0 %v70
    %128 = vmatpush.msra.mxu0 %v68
    %129 = vmatpush.msra.mxu0 %v66
    %130 = vmatpush.msra.mxu0 %v64
    %131 = vmatpush.msra.mxu0 %v62
    %132 = vmatpush.msra.mxu0 %v60
    %133 = vmatmul.f32.gmra.mxu0 %v58
    %v134 = vpop.f32.mrf.mxu0
    %v135 = vadd.f32 %v94, %v134
    %136 = vdwg.mxu0
    %137 = vst [vmem:[#allocation8] sm:$0xff] %v115
    %138 = vst [vmem:[#allocation8 + $0x8] sm:$0xff] %v135
    // Predicated region
    $region26: #{tpu_custom_call.1} parent=1 // pred_check
      _
    $region27: #{tpu_custom_call.1} parent=1 // pred_check_branch
      %140 = sbr.rel (0) target = $region29
    $region28: #{tpu_custom_call.1} parent=1 // pred_region
      %142 = vsyncadd [#allocation4], 0
      %s144 = sshll.u32 [#allocation8], 4
      %s145 = int_to_ptr.vmem [resolvable:$true] %s144
      %s146 = sshll.u32 %s3, 4
      %s147 = int_to_ptr.hbm [resolvable:$true] %s146
      %149 = dma.vmem_to_hbm [thread:$0]  %s145, 256, %s147, [#allocation4]
    $region29: #{tpu_custom_call.1} parent=1 // pred_fallthru
      _
    // Predicated region
    $region30: #{tpu_custom_call.1} parent=1 // pred_check
      _
    $region31: #{tpu_custom_call.1} parent=1 // pred_check_branch
      %151 = sbr.rel (0) target = $region33
    $region32: #{tpu_custom_call.1} parent=1 // pred_region
      %153 = dma.done [#allocation4], 256
    $region33: #{tpu_custom_call.1} parent=1 // pred_fallthru
      _
    %154 = vsyncpa [#allocation3], 1
    %155 = vsyncpa [#allocation6], 1
    %156 = vsyncpa [#allocation4], 1

</llo_original>
